<compile_context>
chip_gen: v6e
topology: v6e:2x2x1
jax: 0.10.0
libtpu: 0.0.40
codegen_flags: <defaults>
</compile_context>

<pallas_src>
import functools

import jax
import jax.numpy as jnp
from jax.experimental import pallas as pl
from jax.experimental.pallas import tpu as pltpu


def _round_up(x, m):
    return ((x + m - 1) // m) * m


def _round_down(x, m):
    return (x // m) * m


@functools.lru_cache(maxsize=None)
def _hw_budget():
    """Generation-aware (per_buffer_budget_bytes, vmem_limit_bytes, multi_tc)."""
    vmem_bytes = 0
    try:
        vmem_bytes = int(getattr(pltpu.get_tpu_info(), "vmem_capacity_bytes", 0) or 0)
    except Exception:
        vmem_bytes = 0
    kind = ""
    try:
        kind = jax.devices()[0].device_kind.lower()
    except Exception:
        pass
    is_v7 = "v7" in kind
    single_tc = any(t in kind for t in
                    ("v5e", "v5 lite", "v5lite", "v6e", "v6 lite", "v6lite"))
    if vmem_bytes <= 0:
        # Conservative defaults if the query is unavailable.
        vmem_bytes = (128 if single_tc else 64) * 1024 * 1024
    if is_v7:
        # v7x has 64 MiB VMEM *per TensorCore*; never budget above that.
        vmem_bytes = min(vmem_bytes, 64 * 1024 * 1024)
    multi_tc = (not single_tc) and (is_v7 or vmem_bytes <= 96 * 1024 * 1024)
    per_buffer = max(4 * 1024 * 1024, vmem_bytes // 6)     # room for 3-deep buffering
    vmem_limit = max(32 * 1024 * 1024,
                     min(vmem_bytes - 8 * 1024 * 1024, (vmem_bytes * 3) // 4))
    return int(per_buffer), int(vmem_limit), bool(multi_tc)


def _choose_tiles(rows, hw, itemsize, per_buffer_budget, multi_tc):
    """Pick (row_tile, hw_chunk) sized against the per-buffer VMEM budget."""
    # Minimum sublane multiple per dtype width: 8 (f32), 16 (bf16), 32 (int8).
    sublane = max(8, 32 // itemsize)
    row_bytes = hw * itemsize

    if multi_tc and rows >= 2 * sublane:
        # Keep >= 2 row blocks so the "parallel" row axis shards across both
        # TensorCores (v7x); single-TC chips (v5e/v6e) use the full cap.
        row_cap = min(1024, _round_up(pl.cdiv(rows, 2), sublane))
    else:
        row_cap = min(1024, _round_up(rows, sublane))
    row_cap = max(row_cap, sublane)

    if sublane * row_bytes <= per_buffer_budget:
        # The whole spatial extent fits in one chunk even at the minimum row
        # tile: grow the row tile as far as the budget (and row_cap) allow.
        hw_chunk = hw
        row_tile = min(row_cap,
                       max(sublane, _round_down(per_buffer_budget // row_bytes, sublane)))
    else:
        # Huge spatial size: chunk the reduction axis with lane-aligned chunks
        # and accumulate across them instead of shrinking the row tile to dust.
        row_tile = min(row_cap, 64)
        hw_chunk = max(128, _round_down(per_buffer_budget // (row_tile * itemsize), 128))
    return row_tile, hw_chunk


def _accumulate(x_ref, sum_acc, max_acc, *, mask_start=None, hw=None):
    """Fold one (row_tile, hw_chunk) chunk into the running sum/max."""
    x = x_ref[...].astype(jnp.float32)
    if mask_start is None:
        x_sum = x
        x_max = x
    else:
        # (1, hw_chunk) row iota, broadcast in the where — much cheaper than a
        # full (row_tile, hw_chunk) broadcasted_iota, and only emitted on the
        # ragged tail chunk.
        col = jax.lax.broadcasted_iota(jnp.int32, (1, x.shape[-1]), 1) + mask_start
        valid = col < hw
        x_sum = jnp.where(valid, x, 0.0)
        x_max = jnp.where(valid, x, -jnp.inf)
    sum_acc[...] = sum_acc[...] + jnp.sum(x_sum, axis=-1, keepdims=True)
    max_acc[...] = jnp.maximum(max_acc[...], jnp.max(x_max, axis=-1, keepdims=True))


def _make_sum_max_kernel(hw, hw_chunk, num_k, nk_per_split, num_splits):
    ragged = (hw % hw_chunk) != 0

    def kernel(x_ref, out_ref, sum_acc, max_acc):
        k = pl.program_id(2)

        @pl.when(k == 0)
        def _():
            sum_acc[...] = jnp.zeros_like(sum_acc)
            max_acc[...] = jnp.full_like(max_acc, -jnp.inf)

        if num_splits == 1:
            if not ragged:
                # Steady state: no masking work at all.
                _accumulate(x_ref, sum_acc, max_acc)
            else:
                @pl.when(k < num_k - 1)
                def _():
                    _accumulate(x_ref, sum_acc, max_acc)

                @pl.when(k == num_k - 1)
                def _():
                    _accumulate(x_ref, sum_acc, max_acc,
                                mask_start=(num_k - 1) * hw_chunk, hw=hw)
        else:
            # hw reduction split across TensorCores: global chunk id from the
            # (parallel) split axis; clamped padding chunks are skipped.
            s = pl.program_id(1)
            g = s * nk_per_split + k
            in_range = g < num_k
            full = (g + 1) * hw_chunk <= hw

            @pl.when(jnp.logical_and(in_range, full))
            def _():
                _accumulate(x_ref, sum_acc, max_acc)

            @pl.when(jnp.logical_and(in_range, jnp.logical_not(full)))
            def _():
                _accumulate(x_ref, sum_acc, max_acc, mask_start=g * hw_chunk, hw=hw)

        @pl.when(k == nk_per_split - 1)
        def _():
            # Single merged (row_tile, 2) output block: [:, 0]=sum, [:, 1]=max.
            out_ref[0, :, 0:1] = sum_acc[...]
            out_ref[0, :, 1:2] = max_acc[...]

    return kernel


def _make_in_spec(block_shape, index_map, multi_buffer):
    if multi_buffer and hasattr(pl, "Buffered"):
        try:
            # Deeper pipelining hides the DMA bubble at row-block boundaries.
            return pl.BlockSpec(block_shape, index_map, pipeline_mode=pl.Buffered(3))
        except TypeError:
            pass
    return pl.BlockSpec(block_shape, index_map)


def _avg_max_pool(x_flat, *, row_tile=None, hw_chunk=None, num_splits=None):
    """x_flat: (rows, hw) -> (avg, max), each (rows, 1) in x_flat.dtype."""
    rows, hw = x_flat.shape
    itemsize = jnp.dtype(x_flat.dtype).itemsize
    per_buffer, vmem_limit, multi_tc = _hw_budget()
    auto_rt, auto_hc = _choose_tiles(rows, hw, itemsize, per_buffer, multi_tc)
    row_tile = auto_rt if row_tile is None else row_tile
    hw_chunk = auto_hc if hw_chunk is None else hw_chunk

    num_i = pl.cdiv(rows, row_tile)
    num_k = pl.cdiv(hw, hw_chunk)
    if num_splits is None:
        # Small-rows / huge-hw on a 2-TC chip: split the reduction itself
        # across cores so the second TensorCore does not idle.
        num_splits = 2 if (multi_tc and num_i == 1 and num_k >= 2) else 1
    num_splits = int(max(1, min(num_splits, num_k)))
    nk_per_split = pl.cdiv(num_k, num_splits)

    if num_splits == 1:
        in_index = lambda i, s, k: (i, k)
    else:
        in_index = lambda i, s, k: (i, jnp.minimum(s * nk_per_split + k, num_k - 1))

    kernel = _make_sum_max_kernel(hw, hw_chunk, num_k, nk_per_split, num_splits)

    partials = pl.pallas_call(
        kernel,
        out_shape=jax.ShapeDtypeStruct((num_splits, rows, 2), jnp.float32),
        grid=(num_i, num_splits, nk_per_split),
        in_specs=[_make_in_spec((row_tile, hw_chunk), in_index,
                                multi_buffer=(nk_per_split > 1))],
        out_specs=pl.BlockSpec((1, row_tile, 2), lambda i, s, k: (s, i, 0)),
        scratch_shapes=[pltpu.VMEM((row_tile, 1), jnp.float32),
                        pltpu.VMEM((row_tile, 1), jnp.float32)],
        compiler_params=pltpu.CompilerParams(
            dimension_semantics=("parallel", "parallel", "arbitrary"),
            vmem_limit_bytes=vmem_limit),
    )(x_flat)

    # Tiny XLA epilogue: combine per-core partials, apply 1/hw, cast once.
    total_sum = jnp.sum(partials[..., 0], axis=0)          # (rows,)
    total_max = jnp.max(partials[..., 1], axis=0)          # (rows,)
    avg = (total_sum * (1.0 / float(hw))).astype(x_flat.dtype)[:, None]
    mx = total_max.astype(x_flat.dtype)[:, None]
    return avg, mx


# Below this the fixed pallas_call/grid overhead dominates; XLA's fused reduce wins.
_SMALL_INPUT_BYTES = 2 * 1024 * 1024


def _avg_max_pool_xla(x_flat):
    xf = x_flat.astype(jnp.float32)
    avg = jnp.mean(xf, axis=1, keepdims=True).astype(x_flat.dtype)
    mx = jnp.max(xf, axis=1, keepdims=True).astype(x_flat.dtype)
    return avg, mx


def multipool2d(x, mode="am", aggregate="sum", *, min_pallas_bytes=_SMALL_INPUT_BYTES):
    """JAX/Pallas port of MultiPool2d.forward."""
    if aggregate not in ("sum", "cat"):
        raise ValueError("Unknown aggrageation: {}.".format(aggregate))
    if x.ndim != 4:
        raise ValueError("Expected tensor with shape (b, c, h, w).")
    b, c, h, w = x.shape

    avg = mx = None
    if any(m in ("a", "m") for m in mode):
        x_flat = x.reshape(b * c, h * w)
        if x_flat.size * jnp.dtype(x_flat.dtype).itemsize < min_pallas_bytes:
            avg_col, max_col = _avg_max_pool_xla(x_flat)
        else:
            avg_col, max_col = _avg_max_pool(x_flat)
        avg = avg_col.reshape(b, c, 1, 1)
        mx = max_col.reshape(b, c, 1, 1)

    results = []
    for m in mode:
        if m == "a":
            results.append(avg)
        elif m == "m":
            results.append(mx)
        else:
            try:
                int(m)
            except Exception:
                raise ValueError("Unknown pooling: {}.".format(m))
            # PowerPooling2d.forward computes the power pool but never assigns
            # it and returns x unchanged — reproduce that (buggy) identity.
            results.append(x)

    # Note: mixing digit modes with "a"/"m" mismatches shapes and raises, just
    # like torch.stack / torch.cat would in the reference module.
    if aggregate == "sum":
        result = jnp.stack(results).sum(axis=0)
    else:
        result = jnp.concatenate(results, axis=-1)
    return result


if __name__ == "__main__":
    key = jax.random.PRNGKey(0)
    x = jax.random.normal(key, (2, 4, 16, 16), dtype=jnp.float32)

    # Force the Pallas path (default threshold would route tiny inputs to XLA).
    out_sum = jax.block_until_ready(multipool2d(x, "am", "sum", min_pallas_bytes=0))
    ref_sum = (jnp.mean(x, axis=(2, 3), keepdims=True)
               + jnp.max(x, axis=(2, 3), keepdims=True))
    assert out_sum.shape == (2, 4, 1, 1)
    assert jnp.allclose(out_sum, ref_sum, atol=1e-5, rtol=1e-5)

    # Tiny-input XLA fallback path agrees.
    out_fb = jax.block_until_ready(multipool2d(x, "am", "sum"))
    assert jnp.allclose(out_fb, ref_sum, atol=1e-5, rtol=1e-5)

    # aggregate="cat" -> (b, c, 1, 2)
    out_cat = jax.block_until_ready(multipool2d(x, "am", "cat", min_pallas_bytes=0))
    ref_cat = jnp.concatenate(
        [jnp.mean(x, axis=(2, 3), keepdims=True),
         jnp.max(x, axis=(2, 3), keepdims=True)], axis=-1)
    assert out_cat.shape == (2, 4, 1, 2)
    assert jnp.allclose(out_cat, ref_cat, atol=1e-5, rtol=1e-5)

    # Chunked reduction path with the pl.when-gated masked tail chunk
    # (hw=400, 128-wide chunks -> last chunk has 16 valid lanes).
    x2 = jax.random.normal(jax.random.PRNGKey(1), (2, 4, 20, 20), dtype=jnp.float32)
    x2_flat = x2.reshape(8, 400)
    ref_avg2 = jnp.mean(x2_flat, axis=1)
    ref_max2 = jnp.max(x2_flat, axis=1)
    avg2, mx2 = _avg_max_pool(x2_flat, row_tile=8, hw_chunk=128, num_splits=1)
    jax.block_until_ready((avg2, mx2))
    assert jnp.allclose(avg2[:, 0], ref_avg2, atol=1e-5, rtol=1e-5)
    assert jnp.allclose(mx2[:, 0], ref_max2, atol=1e-5, rtol=1e-5)

    # Cross-TensorCore split of the reduction axis (v7x small-rows path);
    # also valid on single-TC chips, where the split axis runs sequentially.
    avg2s, mx2s = _avg_max_pool(x2_flat, row_tile=8, hw_chunk=128, num_splits=2)
    jax.block_until_ready((avg2s, mx2s))
    assert jnp.allclose(avg2s[:, 0], ref_avg2, atol=1e-5, rtol=1e-5)
    assert jnp.allclose(mx2s[:, 0], ref_max2, atol=1e-5, rtol=1e-5)

    # Odd chunk count with the split path (exercises the clamped/skipped
    # padding chunk): hw=300 -> 3 chunks of 128 across 2 splits.
    x3 = jax.random.normal(jax.random.PRNGKey(3), (2, 4, 15, 20), dtype=jnp.float32)
    x3_flat = x3.reshape(8, 300)
    avg3, mx3 = _avg_max_pool(x3_flat, row_tile=8, hw_chunk=128, num_splits=2)
    jax.block_until_ready((avg3, mx3))
    assert jnp.allclose(avg3[:, 0], jnp.mean(x3_flat, axis=1), atol=1e-5, rtol=1e-5)
    assert jnp.allclose(mx3[:, 0], jnp.max(x3_flat, axis=1), atol=1e-5, rtol=1e-5)

    # bf16 input: narrow-dtype HBM reads (halved bandwidth), f32 accumulation.
    xb = jax.random.normal(jax.random.PRNGKey(2), (2, 8, 16, 16)).astype(jnp.bfloat16)
    out_b = jax.block_until_ready(multipool2d(xb, "am", "sum", min_pallas_bytes=0))
    ref_b = (jnp.mean(xb.astype(jnp.float32), axis=(2, 3), keepdims=True)
             + jnp.max(xb.astype(jnp.float32), axis=(2, 3), keepdims=True))
    assert out_b.shape == (2, 8, 1, 1)
    assert jnp.allclose(out_b.astype(jnp.float32), ref_b, atol=5e-2, rtol=5e-2)

    print("KERNEL_OK")
</pallas_src>

<mosaic_0001>
module attributes {stable_mosaic.version = 11 : i64} {
  func.func @kernel(%arg0: i32, %arg1: i32, %arg2: i32, %arg3: memref<8x256xf32, #tpu.memory_space<vmem>>, %arg4: memref<1x8x2xf32, #tpu.memory_space<vmem>>, %arg5: memref<8x1xf32, #tpu.memory_space<vmem>>, %arg6: memref<8x1xf32, #tpu.memory_space<vmem>>) attributes {dimension_semantics = [#tpu.dimension_semantics<parallel>, #tpu.dimension_semantics<parallel>, #tpu.dimension_semantics<arbitrary>], iteration_bounds = array<i64: 1, 1, 1>, scalar_prefetch = 0 : i64, scratch_operands = 2 : i64, tpu.core_type = #tpu.core_type<tc>, window_params = [{transform_indices = @transform_0, window_bounds = array<i64: 8, 256>}, {transform_indices = @transform_1, window_bounds = array<i64: 1, 8, 2>}]} {
    %c0_i32 = arith.constant 0 : i32
    %0 = arith.cmpi eq, %arg2, %c0_i32 : i32
    %1 = arith.extui %0 : i1 to i32
    %c0_i32_0 = arith.constant 0 : i32
    %2 = arith.cmpi ne, %1, %c0_i32_0 : i32
    scf.if %2 {
      %cst_13 = arith.constant 0.000000e+00 : f32
      %17 = vector.broadcast %cst_13 : f32 to vector<8x1xf32>
      %c0_14 = arith.constant 0 : index
      %c0_15 = arith.constant 0 : index
      %18 = vector.load %arg5[%c0_14, %c0_15] : memref<8x1xf32, #tpu.memory_space<vmem>>, vector<8x1xf32>
      tpu.vector_store %arg5[%c0_14, %c0_15], %17 {strides = array<i32>} : memref<8x1xf32, #tpu.memory_space<vmem>>, vector<8x1xf32>,
      %cst_16 = arith.constant 0xFF800000 : f32
      %19 = vector.broadcast %cst_16 : f32 to vector<8x1xf32>
      %c0_17 = arith.constant 0 : index
      %c0_18 = arith.constant 0 : index
      %20 = vector.load %arg6[%c0_17, %c0_18] : memref<8x1xf32, #tpu.memory_space<vmem>>, vector<8x1xf32>
      tpu.vector_store %arg6[%c0_17, %c0_18], %19 {strides = array<i32>} : memref<8x1xf32, #tpu.memory_space<vmem>>, vector<8x1xf32>,
    } else {
    }
    %c0 = arith.constant 0 : index
    %c0_1 = arith.constant 0 : index
    %3 = vector.load %arg3[%c0, %c0_1] : memref<8x256xf32, #tpu.memory_space<vmem>>, vector<8x256xf32>
    %c0_2 = arith.constant 0 : index
    %c0_3 = arith.constant 0 : index
    %4 = vector.load %arg5[%c0_2, %c0_3] : memref<8x1xf32, #tpu.memory_space<vmem>>, vector<8x1xf32>
    %cst = arith.constant dense<0.000000e+00> : vector<8xf32>
    %5 = vector.multi_reduction <add>, %3, %cst [1] : vector<8x256xf32> to vector<8xf32>
    %6 = vector.shape_cast %5 : vector<8xf32> to vector<8x1xf32>
    %7 = arith.addf %4, %6 : vector<8x1xf32>
    %c0_4 = arith.constant 0 : index
    %c0_5 = arith.constant 0 : index
    %8 = vector.load %arg5[%c0_4, %c0_5] : memref<8x1xf32, #tpu.memory_space<vmem>>, vector<8x1xf32>
    tpu.vector_store %arg5[%c0_4, %c0_5], %7 {strides = array<i32>} : memref<8x1xf32, #tpu.memory_space<vmem>>, vector<8x1xf32>,
    %c0_6 = arith.constant 0 : index
    %c0_7 = arith.constant 0 : index
    %9 = vector.load %arg6[%c0_6, %c0_7] : memref<8x1xf32, #tpu.memory_space<vmem>>, vector<8x1xf32>
    %cst_8 = arith.constant dense<0xFF800000> : vector<8xf32>
    %10 = vector.multi_reduction <maximumf>, %3, %cst_8 [1] : vector<8x256xf32> to vector<8xf32>
    %11 = vector.shape_cast %10 : vector<8xf32> to vector<8x1xf32>
    %12 = arith.maximumf %9, %11 : vector<8x1xf32>
    %c0_9 = arith.constant 0 : index
    %c0_10 = arith.constant 0 : index
    %13 = vector.load %arg6[%c0_9, %c0_10] : memref<8x1xf32, #tpu.memory_space<vmem>>, vector<8x1xf32>
    tpu.vector_store %arg6[%c0_9, %c0_10], %12 {strides = array<i32>} : memref<8x1xf32, #tpu.memory_space<vmem>>, vector<8x1xf32>,
    %c0_i32_11 = arith.constant 0 : i32
    %14 = arith.cmpi eq, %arg2, %c0_i32_11 : i32
    %15 = arith.extui %14 : i1 to i32
    %c0_i32_12 = arith.constant 0 : i32
    %16 = arith.cmpi ne, %15, %c0_i32_12 : i32
    scf.if %16 {
      %c0_13 = arith.constant 0 : index
      %c0_14 = arith.constant 0 : index
      %17 = vector.load %arg5[%c0_13, %c0_14] : memref<8x1xf32, #tpu.memory_space<vmem>>, vector<8x1xf32>
      %c0_15 = arith.constant 0 : index
      %c0_16 = arith.constant 0 : index
      %c0_17 = arith.constant 0 : index
      %18 = vector.load %arg4[%c0_15, %c0_16, %c0_17] : memref<1x8x2xf32, #tpu.memory_space<vmem>>, vector<1x8x1xf32>
      %19 = vector.shape_cast %18 : vector<1x8x1xf32> to vector<8x1xf32>
      %20 = vector.shape_cast %17 : vector<8x1xf32> to vector<1x8x1xf32>
      tpu.vector_store %arg4[%c0_15, %c0_16, %c0_17], %20 {strides = array<i32>} : memref<1x8x2xf32, #tpu.memory_space<vmem>>, vector<1x8x1xf32>,
      %c0_18 = arith.constant 0 : index
      %c0_19 = arith.constant 0 : index
      %21 = vector.load %arg6[%c0_18, %c0_19] : memref<8x1xf32, #tpu.memory_space<vmem>>, vector<8x1xf32>
      %c0_20 = arith.constant 0 : index
      %c0_21 = arith.constant 0 : index
      %c1 = arith.constant 1 : index
      %22 = vector.load %arg4[%c0_20, %c0_21, %c1] : memref<1x8x2xf32, #tpu.memory_space<vmem>>, vector<1x8x1xf32>
      %23 = vector.shape_cast %22 : vector<1x8x1xf32> to vector<8x1xf32>
      %24 = vector.shape_cast %21 : vector<8x1xf32> to vector<1x8x1xf32>
      tpu.vector_store %arg4[%c0_20, %c0_21, %c1], %24 {strides = array<i32>} : memref<1x8x2xf32, #tpu.memory_space<vmem>>, vector<1x8x1xf32>,
    } else {
    }
    return
  }
  func.func @transform_0(%arg0: i32, %arg1: i32, %arg2: i32) -> (i32, i32) {
    %c0_i32 = arith.constant 0 : i32
    return %arg0, %arg2 : i32, i32
  }
  func.func @transform_1(%arg0: i32, %arg1: i32, %arg2: i32) -> (i32, i32, i32) {
    %c0_i32 = arith.constant 0 : i32
    %c0_i32_0 = arith.constant 0 : i32
    return %arg1, %arg0, %c0_i32 : i32, i32, i32
  }
}

</mosaic_0001>

<llo_original>
// kernel: tpu_custom_call.1
$region0: #{tpu_custom_call.1}
  #allocation0 [shape = 'u32[]', space=smem, size = 0x4, offset = 0x4, fixed_abs, tag = 'smem constant byte address 0x4 - core index']
  #allocation1 [shape = 'u32[144,128]{1,0:T(1,128)}', space=vmem, size = 0x12000, scoped, tag = 'internal scratch']
  #allocation2 [shape = 'f32[8,1]{1,0:T(8,128)}', space=vmem, size = 0x1000, scoped, tag = 'scratch operand']
  #allocation3 [shape = 'f32[8,1]{1,0:T(8,128)}', space=vmem, size = 0x1000, scoped, tag = 'scratch operand']
  %s0 = inlined_call_operand.hbm [shape: f32[8,256], index: 0, kind: input, shape index: {}]
  %s1 = inlined_call_operand.vmem [shape: f32[1,8,2], index: 1, kind: output, shape index: {}]
  %s2 = sld [smem:[#allocation0]]
  $region26: #{tpu_custom_call.1} parent=0
    _
  %s4 = ssub.s32 1, %s2
  %s5 = scalar_select 0, %s4, %s2
  $region1: #{tpu_custom_call.1} parent=0
    #allocation4 [shape = 'u8[8192]{0}', space=vmem, size = 0x2000, scoped, tag = 'input window, operand 0, single buffered']
    #allocation5 [shape = 's32[1]{0}', space=sflag, size = 0x4, scoped, tag = 'scoped memory for tpu_custom_call.1']
    %6 = vsyncpa [#allocation5], 0
    // Predicated region
    $region2: #{tpu_custom_call.1} parent=1 // pred_check
      _
    $region3: #{tpu_custom_call.1} parent=1 // pred_check_branch
      %8 = sbr.rel (0) target = $region5
    $region4: #{tpu_custom_call.1} parent=1 // pred_region
      %s10 = ssub.s32 256, 256
      %11 = vsyncadd [#allocation5], %s10
      %s13 = sshll.u32 [#allocation4], 4
      %s14 = int_to_ptr.vmem [resolvable:$true] %s13
      %16 = dma.hbm_to_vmem [thread:$0]  %s0, 256, %s14, [#allocation5]
    $region5: #{tpu_custom_call.1} parent=1 // pred_fallthru
      _
    // Predicated region
    $region6: #{tpu_custom_call.1} parent=1 // pred_check
      _
    $region7: #{tpu_custom_call.1} parent=1 // pred_check_branch
      %18 = sbr.rel (0) target = $region9
    $region8: #{tpu_custom_call.1} parent=1 // pred_region
      %19 = dma.done [#allocation5], 256
    $region9: #{tpu_custom_call.1} parent=1 // pred_fallthru
      _
    %p20 = scmp.eq.s32.totalorder 0, 0
    // Predicated region
    $region10: #{tpu_custom_call.1} parent=1 // pred_check
      %p21 = pneg %p20
    $region11: #{tpu_custom_call.1} parent=1 // pred_check_branch
      %23 = sbr.rel (%p21) target = $region13
    $region12: #{tpu_custom_call.1} parent=1 // pred_region
      %vm24 = vcmask 7168
      %25 = vst.msk [vmem:[#allocation2] sm:$0xff] %vm24, 0.0
      %26 = vst.msk [vmem:[#allocation3] sm:$0xff] %vm24, -inf
    $region13: #{tpu_custom_call.1} parent=1 // pred_fallthru
      _
    %v27 = vld [vmem:[#allocation4] sm:$0xff]
    %v28 = vld [vmem:[#allocation4 + $0x8] sm:$0xff]
    %v29 = vld [vmem:[#allocation2] sm:$0xff]
    %v30 = vadd.f32 %v27, %v28
    %31 = vadd.xlane.f32.xlu0 %v30
    %v32 = vpop.xlane.xlu0 %31
    %v33 = vadd.f32 %v29, %v32
    %vm34 = vcmask 7168
    %35 = vst.msk [vmem:[#allocation2] sm:$0xff] %vm34, %v33
    %v36 = vld [vmem:[#allocation3] sm:$0xff]
    %v37 = vmax.f32 %v27, %v28
    %38 = vmax.xlane.f32.xlu0 %v37
    %v39 = vpop.xlane.xlu0 %38
    %v40 = vmax.f32 %v36, %v39
    %41 = vst.msk [vmem:[#allocation3] sm:$0xff] %vm34, %v40
    // Predicated region
    $region14: #{tpu_custom_call.1} parent=1 // pred_check
      %p42 = pneg %p20
    $region15: #{tpu_custom_call.1} parent=1 // pred_check_branch
      %44 = sbr.rel (%p42) target = $region17
    $region16: #{tpu_custom_call.1} parent=1 // pred_region
      %v45 = vld [vmem:[#allocation2] sm:$0xff]
      %46 = vst.msk [vmem:[%s1] sm:$0xff] %vm34, %v45
      %v47 = vld [vmem:[#allocation3] sm:$0xff]
      %49 = vrot.lane.b32.xlu0 %v47, 1
      %v50 = vpop.permute.xlu0 %49
      %vm52 = vcmask 15368
      %53 = vst.msk [vmem:[%s1] sm:$0xff] %vm52, %v50
    $region17: #{tpu_custom_call.1} parent=1 // pred_fallthru
      _
    // Predicated region
    $region18: #{tpu_custom_call.1} parent=1 // pred_check
      _
    $region19: #{tpu_custom_call.1} parent=1 // pred_check_branch
      %55 = sbr.rel (0) target = $region21
    $region20: #{tpu_custom_call.1} parent=1 // pred_region
      _
    $region21: #{tpu_custom_call.1} parent=1 // pred_fallthru
      _
    // Predicated region
    $region22: #{tpu_custom_call.1} parent=1 // pred_check
      _
    $region23: #{tpu_custom_call.1} parent=1 // pred_check_branch
      %57 = sbr.rel (0) target = $region25
    $region24: #{tpu_custom_call.1} parent=1 // pred_region
      _
    $region25: #{tpu_custom_call.1} parent=1 // pred_fallthru
      _
    %58 = vsyncpa [#allocation5], 1

</llo_original>
